<compile_context>
chip_gen: v5e
topology: v5e:2x2
jax: 0.10.0
libtpu: 0.0.40
codegen_flags: <defaults>
</compile_context>

<pallas_src>
import functools

import jax
import jax.numpy as jnp
from jax.experimental import pallas as pl
from jax.experimental.pallas import tpu as pltpu

LN_EPS = 1e-5  # nn.LayerNorm default


def _layernorm(x, w, b):
    # f32 math; biased variance (matches PyTorch nn.LayerNorm)
    mean = jnp.mean(x, axis=-1, keepdims=True)
    var = jnp.mean((x - mean) ** 2, axis=-1, keepdims=True)
    return (x - mean) * jax.lax.rsqrt(var + LN_EPS) * w + b


# --------------------------------------------------------------------------- kernels
def patch_embed_kernel(p_ref, w_ref, b_ref, cls_ref, pos_ref, o_ref, *, n_pad):
    # p: (bp, P, Cpp) bf16  w: (Cpp, D) bf16  b/cls: (1, D) f32  pos: (n_pad, D) f32
    # o: (bp, n_pad, D) f32 = [cls ; patches @ w + b ; 0-pad] + pos
    bp, P, Cpp = p_ref.shape
    D = w_ref.shape[1]
    emb = (jnp.dot(p_ref[...].reshape(bp * P, Cpp), w_ref[...],
                   preferred_element_type=jnp.float32)
           + b_ref[...]).reshape(bp, P, D)
    cls = jnp.broadcast_to(cls_ref[...].reshape(1, 1, D), (bp, 1, D))
    rows = [cls, emb]
    pad = n_pad - 1 - P
    if pad > 0:
        rows.append(jnp.zeros((bp, pad, D), jnp.float32))
    o_ref[...] = jnp.concatenate(rows, axis=1) + pos_ref[...]


def blocks_kernel(
    x_ref,
    ln1w_ref, ln1b_ref,
    qkvw_ref,
    projw_ref, projb_ref,
    ln2w_ref, ln2b_ref,
    fc1w_ref, fc1b_ref,
    fc2w_ref, fc2b_ref,
    normw_ref, normb_ref, headw_ref, headb_ref,
    logits_ref,
    res_ref,
    *, num_heads, n_real,
):
    l = pl.program_id(1)

    # Depth step 0: load this batch tile into the VMEM-resident scratch.  The
    # residual stream never returns to HBM -- only the final logits do.
    @pl.when(l == 0)
    def _():
        res_ref[...] = x_ref[...]

    bt, n_pad, D = res_ref.shape
    H = num_heads
    dh = D // H
    scale = dh ** -0.5
    BN = bt * n_pad
    bf16 = jnp.bfloat16

    x = res_ref[...].reshape(BN, D)                                     # f32 residual

    # ---- attention branch ----------------------------------------------------
    xn = _layernorm(x, ln1w_ref[0], ln1b_ref[0])
    # Keep the (BN, 3D) qkv intermediate in bf16 (halves VMEM/vreg pressure).
    qkv = jnp.dot(xn.astype(bf16), qkvw_ref[0],
                  preferred_element_type=jnp.float32).astype(bf16)      # (BN, 3D)

    def split_heads(t):                 # (BN, D) -> (bt*H, n_pad, dh)
        t = t.reshape(bt, n_pad, H, dh)
        return jnp.transpose(t, (0, 2, 1, 3)).reshape(bt * H, n_pad, dh)

    qh = split_heads(qkv[:, 0 * D:1 * D])
    kh = split_heads(qkv[:, 1 * D:2 * D])
    vh = split_heads(qkv[:, 2 * D:3 * D])

    # Fully batched over (example, head): no per-example loop, no sublane concat.
    s = jnp.einsum("bnd,bmd->bnm", qh, kh,
                   preferred_element_type=jnp.float32) * scale          # (bt*H, n, n)
    if n_pad > n_real:                  # mask padded key columns
        col = jax.lax.broadcasted_iota(jnp.int32, (1, n_pad), 1)
        s = s + jnp.where(col < n_real, 0.0, -1e30).astype(jnp.float32)
    s = s - jnp.max(s, axis=-1, keepdims=True)
    ez = jnp.exp(s)
    p = ez * pl.reciprocal(jnp.sum(ez, axis=-1, keepdims=True), approx=True)
    oh = jnp.einsum("bnm,bmd->bnd", p.astype(bf16), vh,
                    preferred_element_type=jnp.float32)                 # (bt*H, n, dh)
    attn_out = jnp.transpose(oh.reshape(bt, H, n_pad, dh),
                             (0, 2, 1, 3)).reshape(BN, D)

    attn_out = (jnp.dot(attn_out.astype(bf16), projw_ref[0],
                        preferred_element_type=jnp.float32) + projb_ref[0])
    x = x + attn_out

    # ---- mlp branch ------------------------------------------------------------
    xn2 = _layernorm(x, ln2w_ref[0], ln2b_ref[0])
    h1 = (jnp.dot(xn2.astype(bf16), fc1w_ref[0],
                  preferred_element_type=jnp.float32) + fc1b_ref[0])
    h1 = jax.nn.gelu(h1, approximate=False)          # exact erf GELU (nn.GELU default)
    h2 = (jnp.dot(h1.astype(bf16), fc2w_ref[0],
                  preferred_element_type=jnp.float32) + fc2b_ref[0])

    x = x + h2
    res_ref[...] = x.reshape(bt, n_pad, D)

    # Last depth step: fused final LayerNorm + classifier head on the CLS token
    # (LayerNorm is per-token, so norm-then-slice == slice-then-norm).
    @pl.when(l == pl.num_programs(1) - 1)
    def _():
        cls = x.reshape(bt, n_pad, D)[:, 0, :]                          # (bt, D)
        cn = _layernorm(cls, normw_ref[...], normb_ref[...])
        logits_ref[...] = (jnp.dot(cn.astype(bf16), headw_ref[...],
                                   preferred_element_type=jnp.float32)
                           + headb_ref[...])


# --------------------------------------------------------------------------- wrapper
def _vmem_limit_bytes():
    # 3/4 of physical VMEM: ~96 MiB on v5e/v6e (128 MiB), ~48 MiB on v7x (64 MiB).
    try:
        cap = getattr(pltpu.get_tpu_info(), "vmem_capacity_bytes", None)
        if cap:
            return int(cap) * 3 // 4
    except Exception:
        pass
    return 48 * 1024 * 1024             # conservative default; fits every generation


def vit_forward(x_img, params, *, patch_size, num_heads, block_b=None):
    B, C, Himg, Wimg = x_img.shape
    p = patch_size
    nh, nw = Himg // p, Wimg // p
    P = nh * nw
    Cpp = C * p * p
    D = params["patch_w"].shape[1]
    num_classes = params["head_w"].shape[1]
    depth = len(params["blocks"])
    bf16 = jnp.bfloat16

    N = P + 1
    n_pad = ((N + 7) // 8) * 8            # pad token axis to a sublane multiple of 8

    # Single batch tile by default: on single-TC v5e/v6e the per-block weight stack
    # is streamed from HBM exactly once for the whole batch.
    # TODO(synk): on v7x (2 TCs/chip) pass block_b = B // 2 (one tile per core);
    # if block_b < B it must divide B and be a multiple of 8 for the logits block.
    if block_b is None:
        block_b = B
    assert B % block_b == 0
    nb = B // block_b

    # -- patch embedding + cls token + pos embedding (+ padding), one kernel ---
    patches = (
        x_img.reshape(B, C, nh, p, nw, p)
        .transpose(0, 2, 4, 1, 3, 5)      # (B, nh, nw, C, p, p): (c, kh, kw) order
        .reshape(B, P, Cpp)
        .astype(bf16)
    )
    pos_pad = jnp.pad(params["pos_embed"][0], ((0, n_pad - N), (0, 0)))  # (n_pad, D)
    cls = params["cls_token"][0]                                         # (1, D)

    bp = min(B, 8)                       # batch the patch-embed matmul
    while B % bp:
        bp -= 1

    tokens = pl.pallas_call(
        functools.partial(patch_embed_kernel, n_pad=n_pad),
        out_shape=jax.ShapeDtypeStruct((B, n_pad, D), jnp.float32),
        grid=(B // bp,),
        in_specs=[
            pl.BlockSpec((bp, P, Cpp), lambda b: (b, 0, 0)),
            pl.BlockSpec((Cpp, D), lambda b: (0, 0)),
            pl.BlockSpec((1, D), lambda b: (0, 0)),
            pl.BlockSpec((1, D), lambda b: (0, 0)),
            pl.BlockSpec((n_pad, D), lambda b: (0, 0)),
        ],
        out_specs=pl.BlockSpec((bp, n_pad, D), lambda b: (b, 0, 0)),
        compiler_params=pltpu.CompilerParams(dimension_semantics=("parallel",)),
    )(patches, params["patch_w"].astype(bf16), params["patch_b"], cls, pos_pad)

    # -- all transformer blocks + final norm + head, one pallas_call ------------
    blocks = params["blocks"]

    def stack(name, dtype=jnp.float32):
        return jnp.stack([blk[name] for blk in blocks]).astype(dtype)

    w_list = [
        stack("ln1_w"), stack("ln1_b"),
        stack("qkv_w", bf16),
        stack("proj_w", bf16), stack("proj_b"),
        stack("ln2_w"), stack("ln2_b"),
        stack("fc1_w", bf16), stack("fc1_b"),
        stack("fc2_w", bf16), stack("fc2_b"),
    ]
    w_specs = [
        pl.BlockSpec((1,) + w.shape[1:], lambda b, l: (l, 0, 0)) for w in w_list
    ]
    head_args = [params["norm_w"], params["norm_b"],
                 params["head_w"].astype(bf16), params["head_b"]]
    head_specs = [pl.BlockSpec(a.shape, lambda b, l: (0, 0)) for a in head_args]

    kernel = functools.partial(blocks_kernel, num_heads=num_heads, n_real=N)
    logits = pl.pallas_call(
        kernel,
        out_shape=jax.ShapeDtypeStruct((B, num_classes), jnp.float32),
        grid=(nb, depth),                 # batch tiles (parallel) x depth (arbitrary)
        in_specs=[pl.BlockSpec((block_b, n_pad, D), lambda b, l: (b, 0, 0))]
                 + w_specs + head_specs,
        out_specs=pl.BlockSpec((block_b, num_classes), lambda b, l: (b, 0)),
        scratch_shapes=[pltpu.VMEM((block_b, n_pad, D), jnp.float32)],
        compiler_params=pltpu.CompilerParams(
            dimension_semantics=("parallel", "arbitrary"),
            vmem_limit_bytes=_vmem_limit_bytes(),
        ),
    )(tokens, *w_list, *head_args)
    return logits


# --------------------------------------------------------------------------- params
def init_params(key, *, in_chans, patch_size, embed_dim, depth, mlp_ratio,
                num_classes, num_patches):
    D = embed_dim
    Hm = int(D * mlp_ratio)
    Cpp = in_chans * patch_size * patch_size
    keys = jax.random.split(key, 4 + depth)

    def tn(k, shape):  # trunc_normal_(std=0.02)
        return jax.random.truncated_normal(k, -2.0, 2.0, shape, jnp.float32) * 0.02

    params = {
        "patch_w": tn(keys[0], (Cpp, D)),
        "patch_b": jnp.zeros((1, D), jnp.float32),
        "cls_token": tn(keys[1], (1, 1, D)),
        "pos_embed": tn(keys[2], (1, num_patches + 1, D)),
        "norm_w": jnp.ones((1, D), jnp.float32),
        "norm_b": jnp.zeros((1, D), jnp.float32),
        "head_w": tn(keys[3], (D, num_classes)),
        "head_b": jnp.zeros((1, num_classes), jnp.float32),
        "blocks": [],
    }
    for i in range(depth):
        bk = jax.random.split(keys[4 + i], 4)
        params["blocks"].append({
            "ln1_w": jnp.ones((1, D), jnp.float32),
            "ln1_b": jnp.zeros((1, D), jnp.float32),
            "qkv_w": tn(bk[0], (D, 3 * D)),          # qkv_bias=False; (qkv, head, d) cols
            "proj_w": tn(bk[1], (D, D)),
            "proj_b": jnp.zeros((1, D), jnp.float32),
            "ln2_w": jnp.ones((1, D), jnp.float32),
            "ln2_b": jnp.zeros((1, D), jnp.float32),
            "fc1_w": tn(bk[2], (D, Hm)),
            "fc1_b": jnp.zeros((1, Hm), jnp.float32),
            "fc2_w": tn(bk[3], (Hm, D)),
            "fc2_b": jnp.zeros((1, D), jnp.float32),
        })
    return params


# --------------------------------------------------------------------------- main
if __name__ == "__main__":
    # Small ViT config: 16x16 image, 4x4 patches -> 16 patches + 1 CLS = 17 tokens
    B, C, IMG, PATCH = 2, 3, 16, 4
    EMBED, DEPTH, HEADS, MLP_RATIO, NUM_CLASSES = 64, 2, 4, 4.0, 16
    NUM_PATCHES = (IMG // PATCH) ** 2

    key = jax.random.PRNGKey(0)
    k_x, k_p = jax.random.split(key)
    x = jax.random.normal(k_x, (B, C, IMG, IMG), jnp.float32)   # NCHW like PyTorch

    params = init_params(
        k_p,
        in_chans=C,
        patch_size=PATCH,
        embed_dim=EMBED,
        depth=DEPTH,
        mlp_ratio=MLP_RATIO,
        num_classes=NUM_CLASSES,
        num_patches=NUM_PATCHES,
    )

    logits = vit_forward(x, params, patch_size=PATCH, num_heads=HEADS)
    jax.block_until_ready(logits)
    assert logits.shape == (B, NUM_CLASSES) and logits.dtype == jnp.float32
    assert bool(jnp.all(jnp.isfinite(logits)))
    print("KERNEL_OK")
</pallas_src>

<mosaic_0001>
module attributes {stable_mosaic.version = 11 : i64} {
  func.func @patch_embed_kernel(%arg0: i32, %arg1: memref<2x16x48xbf16, #tpu.memory_space<vmem>>, %arg2: memref<48x64xbf16, #tpu.memory_space<vmem>>, %arg3: memref<1x64xf32, #tpu.memory_space<vmem>>, %arg4: memref<1x64xf32, #tpu.memory_space<vmem>>, %arg5: memref<24x64xf32, #tpu.memory_space<vmem>>, %arg6: memref<2x24x64xf32, #tpu.memory_space<vmem>>) attributes {dimension_semantics = [#tpu.dimension_semantics<parallel>], iteration_bounds = array<i64: 1>, scalar_prefetch = 0 : i64, scratch_operands = 0 : i64, tpu.core_type = #tpu.core_type<tc>, window_params = [{transform_indices = @transform_0, window_bounds = array<i64: 2, 16, 48>}, {pipeline_mode = #tpu.pipeline_mode<synchronous>, transform_indices = @transform_1, window_bounds = array<i64: 48, 64>}, {pipeline_mode = #tpu.pipeline_mode<synchronous>, transform_indices = @transform_2, window_bounds = array<i64: 1, 64>}, {pipeline_mode = #tpu.pipeline_mode<synchronous>, transform_indices = @transform_3, window_bounds = array<i64: 1, 64>}, {pipeline_mode = #tpu.pipeline_mode<synchronous>, transform_indices = @transform_4, window_bounds = array<i64: 24, 64>}, {transform_indices = @transform_5, window_bounds = array<i64: 2, 24, 64>}]} {
    %c0 = arith.constant 0 : index
    %c0_0 = arith.constant 0 : index
    %c0_1 = arith.constant 0 : index
    %0 = vector.load %arg1[%c0, %c0_0, %c0_1] : memref<2x16x48xbf16, #tpu.memory_space<vmem>>, vector<2x16x48xbf16>
    %1 = vector.shape_cast %0 : vector<2x16x48xbf16> to vector<32x48xbf16>
    %c0_2 = arith.constant 0 : index
    %c0_3 = arith.constant 0 : index
    %2 = vector.load %arg2[%c0_2, %c0_3] : memref<48x64xbf16, #tpu.memory_space<vmem>>, vector<48x64xbf16>
    %cst = arith.constant dense<0.000000e+00> : vector<32x64xf32>
    %3 = tpu.matmul %1, %2, %cst {dimension_numbers = #tpu.dot_dimension_numbers<[1], [0], [0], [1], [0, 0, 1, 1], [], []>} : vector<32x48xbf16>, vector<48x64xbf16>, vector<32x64xf32> -> vector<32x64xf32>
    %c0_4 = arith.constant 0 : index
    %c0_5 = arith.constant 0 : index
    %4 = vector.load %arg3[%c0_4, %c0_5] : memref<1x64xf32, #tpu.memory_space<vmem>>, vector<1x64xf32>
    %5 = vector.broadcast %4 : vector<1x64xf32> to vector<32x64xf32>
    %6 = arith.addf %3, %5 : vector<32x64xf32>
    %7 = vector.shape_cast %6 : vector<32x64xf32> to vector<2x16x64xf32>
    %c0_6 = arith.constant 0 : index
    %c0_7 = arith.constant 0 : index
    %8 = vector.load %arg4[%c0_6, %c0_7] : memref<1x64xf32, #tpu.memory_space<vmem>>, vector<1x64xf32>
    %9 = vector.shape_cast %8 : vector<1x64xf32> to vector<1x1x64xf32>
    %10 = vector.shape_cast %9 : vector<1x1x64xf32> to vector<1x1x64xf32>
    %11 = vector.broadcast %10 : vector<1x1x64xf32> to vector<2x1x64xf32>
    %cst_8 = arith.constant 0.000000e+00 : f32
    %12 = vector.broadcast %cst_8 : f32 to vector<2x7x64xf32>
    %13 = tpu.concatenate %11, %7, %12 in 1 : vector<2x1x64xf32>, vector<2x16x64xf32>, vector<2x7x64xf32> -> vector<2x24x64xf32>
    %c0_9 = arith.constant 0 : index
    %c0_10 = arith.constant 0 : index
    %14 = vector.load %arg5[%c0_9, %c0_10] : memref<24x64xf32, #tpu.memory_space<vmem>>, vector<24x64xf32>
    %15 = vector.shape_cast %14 : vector<24x64xf32> to vector<1x24x64xf32>
    %16 = vector.broadcast %15 : vector<1x24x64xf32> to vector<2x24x64xf32>
    %17 = arith.addf %13, %16 : vector<2x24x64xf32>
    %c0_11 = arith.constant 0 : index
    %c0_12 = arith.constant 0 : index
    %c0_13 = arith.constant 0 : index
    %18 = vector.load %arg6[%c0_11, %c0_12, %c0_13] : memref<2x24x64xf32, #tpu.memory_space<vmem>>, vector<2x24x64xf32>
    tpu.vector_store %arg6[%c0_11, %c0_12, %c0_13], %17 {strides = array<i32>} : memref<2x24x64xf32, #tpu.memory_space<vmem>>, vector<2x24x64xf32>,
    return
  }
  func.func @transform_0(%arg0: i32) -> (i32, i32, i32) {
    %c0_i32 = arith.constant 0 : i32
    %c0_i32_0 = arith.constant 0 : i32
    %c0_i32_1 = arith.constant 0 : i32
    return %arg0, %c0_i32, %c0_i32_0 : i32, i32, i32
  }
  func.func @transform_1(%arg0: i32) -> (i32, i32) {
    %c0_i32 = arith.constant 0 : i32
    %c0_i32_0 = arith.constant 0 : i32
    %c0_i32_1 = arith.constant 0 : i32
    return %c0_i32, %c0_i32_0 : i32, i32
  }
  func.func @transform_2(%arg0: i32) -> (i32, i32) {
    %c0_i32 = arith.constant 0 : i32
    %c0_i32_0 = arith.constant 0 : i32
    %c0_i32_1 = arith.constant 0 : i32
    return %c0_i32, %c0_i32_0 : i32, i32
  }
  func.func @transform_3(%arg0: i32) -> (i32, i32) {
    %c0_i32 = arith.constant 0 : i32
    %c0_i32_0 = arith.constant 0 : i32
    %c0_i32_1 = arith.constant 0 : i32
    return %c0_i32, %c0_i32_0 : i32, i32
  }
  func.func @transform_4(%arg0: i32) -> (i32, i32) {
    %c0_i32 = arith.constant 0 : i32
    %c0_i32_0 = arith.constant 0 : i32
    %c0_i32_1 = arith.constant 0 : i32
    return %c0_i32, %c0_i32_0 : i32, i32
  }
  func.func @transform_5(%arg0: i32) -> (i32, i32, i32) {
    %c0_i32 = arith.constant 0 : i32
    %c0_i32_0 = arith.constant 0 : i32
    %c0_i32_1 = arith.constant 0 : i32
    return %arg0, %c0_i32, %c0_i32_0 : i32, i32, i32
  }
}

</mosaic_0001>

<llo_original>
// kernel: tpu_custom_call.1
$region0: #{tpu_custom_call.1}
  #allocation0 [shape = 'u32[]', space=smem, size = 0x4, offset = 0x4, fixed_abs, tag = 'smem constant byte address 0x4 - core index']
  #allocation1 [shape = 'u32[72,128]{1,0:T(1,128)}', space=vmem, size = 0x9000, scoped, tag = 'internal scratch']
  %s0 = inlined_call_operand.hbm [shape: bf16[2,16,48], index: 0, kind: input, shape index: {}]
  %s1 = inlined_call_operand.hbm [shape: bf16[48,64], index: 1, kind: input, shape index: {}]
  %s2 = inlined_call_operand.vmem [shape: f32[1,64], index: 2, kind: input, shape index: {}]
  %s3 = inlined_call_operand.vmem [shape: f32[1,64], index: 3, kind: input, shape index: {}]
  %s4 = inlined_call_operand.hbm [shape: f32[24,64], index: 4, kind: input, shape index: {}]
  %s5 = inlined_call_operand.hbm [shape: f32[2,24,64], index: 5, kind: output, shape index: {}]
  %s6 = sld [smem:[#allocation0]]
  $region42: #{tpu_custom_call.1} parent=0
    _
  %s8 = ssub.s32 1, %s6
  %s9 = scalar_select 0, %s8, %s6
  $region1: #{tpu_custom_call.1} parent=0
    #allocation2 [shape = 'u8[8192]{0}', space=vmem, size = 0x2000, scoped, tag = 'input window, operand 0, single buffered']
    #allocation3 [shape = 's32[1]{0}', space=sflag, size = 0x4, scoped, tag = 'scoped memory for tpu_custom_call.1']
    #allocation4 [shape = 's32[1]{0}', space=sflag, size = 0x4, scoped, tag = 'scoped memory for tpu_custom_call.1']
    #allocation5 [shape = 'u8[12288]{0}', space=vmem, size = 0x3000, scoped, tag = 'input window, operand 1, single buffered']
    #allocation6 [shape = 's32[1]{0}', space=sflag, size = 0x4, scoped, tag = 'scoped memory for tpu_custom_call.1']
    #allocation7 [shape = 'u8[12288]{0}', space=vmem, size = 0x3000, scoped, tag = 'input window, operand 4, single buffered']
    #allocation8 [shape = 'u8[24576]{0}', space=vmem, size = 0x6000, scoped, tag = 'output window, operand 0, single buffered']
    %10 = vsyncpa [#allocation3], 0
    %11 = vsyncpa [#allocation6], 0
    %12 = vsyncpa [#allocation4], 0
    // Predicated region
    $region2: #{tpu_custom_call.1} parent=1 // pred_check
      _
    $region3: #{tpu_custom_call.1} parent=1 // pred_check_branch
      %14 = sbr.rel (0) target = $region5
    $region4: #{tpu_custom_call.1} parent=1 // pred_region
      %16 = vsyncadd [#allocation3], 0
      %s17 = sshll.u32 %s0, 4
      %s18 = int_to_ptr.hbm [resolvable:$true] %s17
      %s19 = sshll.u32 [#allocation2], 4
      %s20 = int_to_ptr.vmem [resolvable:$true] %s19
      %25 = dma.hbm_to_vmem [thread:$0]  %s18, 256, %s20, [#allocation3], 64, 64, 4
    $region5: #{tpu_custom_call.1} parent=1 // pred_fallthru
      _
    // Predicated region
    $region6: #{tpu_custom_call.1} parent=1 // pred_check
      _
    $region7: #{tpu_custom_call.1} parent=1 // pred_check_branch
      %27 = sbr.rel (0) target = $region9
    $region8: #{tpu_custom_call.1} parent=1 // pred_region
      %29 = vsyncadd [#allocation6], 0
      %s30 = sshll.u32 %s1, 4
      %s31 = int_to_ptr.hbm [resolvable:$true] %s30
      %s32 = sshll.u32 [#allocation5], 4
      %s33 = int_to_ptr.vmem [resolvable:$true] %s32
      %38 = dma.hbm_to_vmem [thread:$0]  %s31, 384, %s33, [#allocation6], 64, 64, 4
    $region9: #{tpu_custom_call.1} parent=1 // pred_fallthru
      _
    // Predicated region
    $region10: #{tpu_custom_call.1} parent=1 // pred_check
      _
    $region11: #{tpu_custom_call.1} parent=1 // pred_check_branch
      %40 = sbr.rel (0) target = $region13
    $region12: #{tpu_custom_call.1} parent=1 // pred_region
      _
    $region13: #{tpu_custom_call.1} parent=1 // pred_fallthru
      _
    // Predicated region
    $region14: #{tpu_custom_call.1} parent=1 // pred_check
      _
    $region15: #{tpu_custom_call.1} parent=1 // pred_check_branch
      %42 = sbr.rel (0) target = $region17
    $region16: #{tpu_custom_call.1} parent=1 // pred_region
      _
    $region17: #{tpu_custom_call.1} parent=1 // pred_fallthru
      _
    // Predicated region
    $region18: #{tpu_custom_call.1} parent=1 // pred_check
      _
    $region19: #{tpu_custom_call.1} parent=1 // pred_check_branch
      %44 = sbr.rel (0) target = $region21
    $region20: #{tpu_custom_call.1} parent=1 // pred_region
      %46 = vsyncadd [#allocation6], 0
      %s47 = sshll.u32 %s4, 4
      %s48 = int_to_ptr.hbm [resolvable:$true] %s47
      %s49 = sshll.u32 [#allocation7], 4
      %s50 = int_to_ptr.vmem [resolvable:$true] %s49
      %55 = dma.hbm_to_vmem [thread:$0]  %s48, 384, %s50, [#allocation6], 128, 128, 8
    $region21: #{tpu_custom_call.1} parent=1 // pred_fallthru
      _
    // Predicated region
    $region22: #{tpu_custom_call.1} parent=1 // pred_check
      _
    $region23: #{tpu_custom_call.1} parent=1 // pred_check_branch
      %57 = sbr.rel (0) target = $region25
    $region24: #{tpu_custom_call.1} parent=1 // pred_region
      %59 = dma.done [#allocation3], 256
    $region25: #{tpu_custom_call.1} parent=1 // pred_fallthru
      _
    // Predicated region
    $region26: #{tpu_custom_call.1} parent=1 // pred_check
      _
    $region27: #{tpu_custom_call.1} parent=1 // pred_check_branch
      %61 = sbr.rel (0) target = $region29
    $region28: #{tpu_custom_call.1} parent=1 // pred_region
      %63 = dma.done [#allocation6], 384
    $region29: #{tpu_custom_call.1} parent=1 // pred_fallthru
      _
    // Predicated region
    $region30: #{tpu_custom_call.1} parent=1 // pred_check
      _
    $region31: #{tpu_custom_call.1} parent=1 // pred_check_branch
      %65 = sbr.rel (0) target = $region33
    $region32: #{tpu_custom_call.1} parent=1 // pred_region
      %67 = dma.done [#allocation6], 384
    $region33: #{tpu_custom_call.1} parent=1 // pred_fallthru
      _
    %v69 = vld [vmem:[#allocation2] sm:$0xf]
    %v70 = vld [vmem:[#allocation2 + $0x4] sm:$0xf]
    %v71 = vld [vmem:[#allocation2 + $0x8] sm:$0xf]
    %v72 = vld [vmem:[#allocation2 + $0xc] sm:$0xf]
    %v73 = vld [vmem:[#allocation5] sm:$0xf]
    %v74 = vld [vmem:[#allocation5 + $0x4] sm:$0xf]
    %v75 = vld [vmem:[#allocation5 + $0x8] sm:$0xf]
    %v76 = vld [vmem:[#allocation5 + $0xc] sm:$0xf]
    %v77 = vld [vmem:[#allocation5 + $0x10] sm:$0xf]
    %v78 = vld [vmem:[#allocation5 + $0x14] sm:$0xf]
    %v79 = vld [vmem:[%s2] sm:$0x1]
    %v81 = vperm.slane %v79, 0
    %v87 = vunpack.c.l.b16 %v69
    %v88 = vunpack.c.l.b16 %v70
    %v89 = vunpack.c.l.b16 %v71
    %v90 = vunpack.c.l.b16 %v72
    %v91 = vpack.c.b16 %v88, %v87
    %v92 = vpack.c.b16 %v90, %v89
    %v99 = vunpack.c.l.b16 %v73
    %v100 = vunpack.c.l.b16 %v74
    %v101 = vunpack.c.l.b16 %v75
    %v102 = vunpack.c.l.b16 %v76
    %v103 = vunpack.c.l.b16 %v77
    %v104 = vunpack.c.l.b16 %v78
    %v105 = vpack.c.b16 %v100, %v99
    %v106 = vpack.c.b16 %v102, %v101
    %v107 = vpack.c.b16 %v104, %v103
    %vm111 = vcmask 392192
    %v113 = vsel %vm111, %v91, 0
    %v116 = vsel %vm111, %v92, 0
    %118 = vmatpush.bf16.msra.mxu0 0
    %119 = vmatpush.bf16.msra.mxu0 0
    %120 = vmatpush.bf16.msra.mxu0 0
    %121 = vmatpush.bf16.msra.mxu0 0
    %122 = vmatpush.bf16.msra.mxu0 0
    %123 = vmatpush.bf16.msra.mxu0 %v107
    %124 = vmatpush.bf16.msra.mxu0 %v106
    %125 = vmatpush.bf16.msra.mxu0 %v105
    %126 = vmatmul.bf16.gmra.mxu0 %v113
    %v127 = vpop.f32.mrf.mxu0
    %v128 = vadd.f32 %v81, %v127
    %v129 = vpop.f32.mrf.mxu0
    %v130 = vadd.f32 %v81, %v129
    %131 = vmatmul.bf16.gmra.mxu0 %v116
    %v132 = vpop.f32.mrf.mxu0
    %v133 = vadd.f32 %v81, %v132
    %v134 = vpop.f32.mrf.mxu0
    %v135 = vadd.f32 %v81, %v134
    %136 = vdwg.mxu0
    %v137 = vld [vmem:[%s3] sm:$0x1]
    %vm142 = vcmask 1040384
    %v143 = vrot.slane %v128, 7
    %v144 = vrot.slane %v130, 7
    %v145 = vsel %vm142, %v143, %v144
    %v146 = vrot.slane %v133, 7
    %v147 = vrot.slane %v135, 7
    %v148 = vsel %vm142, %v146, %v147
    %v155 = vsel %vm142, %v137, %v143
    %v156 = vsel %vm142, %v137, %v146
    %v157 = vsel %vm142, %v144, 0.0
    %v158 = vsel %vm142, %v147, 0.0
    %v159 = vld [vmem:[#allocation7] sm:$0xff]
    %v160 = vld [vmem:[#allocation7 + $0x8] sm:$0xff]
    %v161 = vld [vmem:[#allocation7 + $0x10] sm:$0xff]
    %v162 = vadd.f32 %v155, %v159
    %v163 = vadd.f32 %v145, %v160
    %v164 = vadd.f32 %v157, %v161
    %v165 = vadd.f32 %v156, %v159
    %v166 = vadd.f32 %v148, %v160
    %v167 = vadd.f32 %v158, %v161
    %vm168 = vcmask 523264
    %169 = vst.msk [vmem:[#allocation8] sm:$0xff] %vm168, %v162
    %170 = vst.msk [vmem:[#allocation8 + $0x8] sm:$0xff] %vm168, %v163
    %171 = vst.msk [vmem:[#allocation8 + $0x10] sm:$0xff] %vm168, %v164
    %172 = vst.msk [vmem:[#allocation8 + $0x18] sm:$0xff] %vm168, %v165
    %173 = vst.msk [vmem:[#allocation8 + $0x20] sm:$0xff] %vm168, %v166
    %174 = vst.msk [vmem:[#allocation8 + $0x28] sm:$0xff] %vm168, %v167
    // Predicated region
    $region34: #{tpu_custom_call.1} parent=1 // pred_check
      _
    $region35: #{tpu_custom_call.1} parent=1 // pred_check_branch
      %176 = sbr.rel (0) target = $region37
    $region36: #{tpu_custom_call.1} parent=1 // pred_region
      %178 = vsyncadd [#allocation4], 0
      %s179 = sshll.u32 [#allocation8], 4
      %s180 = int_to_ptr.vmem [resolvable:$true] %s179
      %s181 = sshll.u32 %s5, 4
      %s182 = int_to_ptr.hbm [resolvable:$true] %s181
      %187 = dma.vmem_to_hbm [thread:$0]  %s180, 768, %s182, [#allocation4], 128, 128, 8
    $region37: #{tpu_custom_call.1} parent=1 // pred_fallthru
      _
    // Predicated region
    $region38: #{tpu_custom_call.1} parent=1 // pred_check
      _
    $region39: #{tpu_custom_call.1} parent=1 // pred_check_branch
      %189 = sbr.rel (0) target = $region41
    $region40: #{tpu_custom_call.1} parent=1 // pred_region
      %191 = dma.done [#allocation4], 768
    $region41: #{tpu_custom_call.1} parent=1 // pred_fallthru
      _
    %192 = vsyncpa [#allocation3], 1
    %193 = vsyncpa [#allocation6], 1
    %194 = vsyncpa [#allocation4], 1

</llo_original>
